<compile_context>
chip_gen: v5e
topology: v5e:2x2
jax: 0.10.0
libtpu: 0.0.40
codegen_flags: <defaults>
</compile_context>

<pallas_src>
import functools

import jax
import jax.numpy as jnp
import numpy as np
from jax.experimental import pallas as pl
from jax.experimental.pallas import tpu as pltpu


# ----------------------------- Pallas kernel --------------------------------


def mpnn_layer_kernel(h_ref, e_ref, adj_ref,
                      w12_ref, w3_ref, bm_ref,
                      wi_ref, wh_ref, bi_ref, bh_ref,
                      out_ref, *, use_activation):
    BB, N, H = h_ref.shape
    E = e_ref.shape[-1]

    h3 = h_ref[...]                      # (BB, N, H)
    adj = adj_ref[...]                   # (BB, N, N)
    e = e_ref[...]                       # (BB, N, N, E)

    # Flatten graphs for all per-node dense matmuls (rows never mix graphs).
    hf = h3.reshape(BB * N, H)           # (BB*N, H)

    # ---- MPNNMakeMessage + mean over neighbours j, fused ----
    # m[b,i,j] = h[b,j]@W1 + h[b,i]@W2 + e[b,i,j]@W3 + b_m, masked by adj.
    # mean_j(adj*m) = (adj@(hW1) + deg*(hW2) + (sum_j adj*e)@W3 + deg*b_m)/N
    hw12 = jnp.dot(hf, w12_ref[...], preferred_element_type=jnp.float32)  # (BB*N, 2H)
    hW1 = hw12[:, :H].reshape(BB, N, H)
    hW2 = hw12[:, H:]                                                      # (BB*N, H)

    deg = jnp.sum(adj, axis=2, keepdims=True)            # (BB, N, 1)
    degf = deg.reshape(BB * N, 1)                        # (BB*N, 1)

    ew = jnp.sum(adj[..., None] * e, axis=2)             # (BB, N, E) masked edge sum
    ewf = ew.reshape(BB * N, E)

    adj_msg = jnp.einsum('bij,bjh->bih', adj, hW1,
                         preferred_element_type=jnp.float32)               # (BB, N, H)
    adj_msg = adj_msg.reshape(BB * N, H)

    m = (adj_msg
         + degf * hW2
         + jnp.dot(ewf, w3_ref[...], preferred_element_type=jnp.float32)
         + degf * bm_ref[...]) * (1.0 / N)                                  # (BB*N, H)

    # ---- GRUCell(input = h, hidden = m): two fused (H, 3H) matmuls ----
    gi = jnp.dot(hf, wi_ref[...], preferred_element_type=jnp.float32) + bi_ref[...]
    gh = jnp.dot(m, wh_ref[...], preferred_element_type=jnp.float32) + bh_ref[...]
    r = jax.nn.sigmoid(gi[:, :H] + gh[:, :H])
    z = jax.nn.sigmoid(gi[:, H:2 * H] + gh[:, H:2 * H])
    n = jnp.tanh(gi[:, 2 * H:] + r * gh[:, 2 * H:])
    new_h = (1.0 - z) * n + z * m

    if use_activation:                   # SiLU
        new_h = new_h * jax.nn.sigmoid(new_h)

    out_ref[...] = new_h.reshape(BB, N, H).astype(out_ref.dtype)


# ------------------------------- wrapper -------------------------------------


def mpnn_layer(h, e, adj, params, *, use_activation=False, use_dropout=False,
               block_b=None):
    """Forward pass of MPNNLayer. Returns (new_h, e, adj) like the PyTorch module."""
    del use_dropout  # Dropout is an eval-mode identity.  TODO(synk): train mode.
    B, N, H = h.shape
    E = e.shape[-1]
    w12, w3, bm, wi, wh, bi, bh = params

    if block_b is None:
        block_b = B                      # tiny batches: whole batch in one step
    assert B % block_b == 0
    grid = (B // block_b,)

    kern = functools.partial(mpnn_layer_kernel, use_activation=use_activation)

    def const_spec(shape):
        return pl.BlockSpec(shape, lambda i, _nd=len(shape): (0,) * _nd)

    in_specs = [
        pl.BlockSpec((block_b, N, H), lambda i: (i, 0, 0)),        # h
        pl.BlockSpec((block_b, N, N, E), lambda i: (i, 0, 0, 0)),  # e
        pl.BlockSpec((block_b, N, N), lambda i: (i, 0, 0)),        # adj
        const_spec((H, 2 * H)),    # [W1 | W2]
        const_spec((E, H)),        # W3
        const_spec((1, H)),        # b_m
        const_spec((H, 3 * H)),    # [W_ir | W_iz | W_in]
        const_spec((H, 3 * H)),    # [W_hr | W_hz | W_hn]
        const_spec((1, 3 * H)),    # [b_ir | b_iz | b_in]
        const_spec((1, 3 * H)),    # [b_hr | b_hz | b_hn]
    ]

    new_h = pl.pallas_call(
        kern,
        out_shape=jax.ShapeDtypeStruct((B, N, H), jnp.float32),
        grid=grid,
        in_specs=in_specs,
        out_specs=pl.BlockSpec((block_b, N, H), lambda i: (i, 0, 0)),
        compiler_params=pltpu.CompilerParams(
            dimension_semantics=("parallel",)),
    )(h, e, adj, w12, w3, bm, wi, wh, bi, bh)

    return new_h, e, adj


# ------------------------ pure-JAX reference (for checking) ------------------


def _mpnn_layer_ref(h, e, adj, params, use_activation):
    w12, w3, bm, wi, wh, bi, bh = params
    B, N, H = h.shape
    w1, w2 = w12[:, :H], w12[:, H:]
    h1 = jnp.broadcast_to(h[:, None, :, :], (B, N, N, H))   # h[b,j] at [b,i,j]
    h2 = jnp.broadcast_to(h[:, :, None, :], (B, N, N, H))   # h[b,i] at [b,i,j]
    m = h1 @ w1 + h2 @ w2 + e @ w3 + bm[0]
    m = m * adj[..., None]
    m = m.mean(axis=2)                                       # mean over all N (as PyTorch)
    x = h.reshape(-1, H)
    hid = m.reshape(-1, H)
    gi = x @ wi + bi[0]
    gh = hid @ wh + bh[0]
    r = jax.nn.sigmoid(gi[:, :H] + gh[:, :H])
    z = jax.nn.sigmoid(gi[:, H:2 * H] + gh[:, H:2 * H])
    n = jnp.tanh(gi[:, 2 * H:] + r * gh[:, 2 * H:])
    new_h = ((1.0 - z) * n + z * hid).reshape(B, N, H)
    if use_activation:
        new_h = new_h * jax.nn.sigmoid(new_h)
    return new_h


# ----------------------------- parameter init --------------------------------


def _uniform(key, shape, fan_in):
    bound = 1.0 / np.sqrt(fan_in)
    return jax.random.uniform(key, shape, jnp.float32, -bound, bound)


def init_mpnn_layer_params(key, H, E):
    ks = jax.random.split(key, 7)
    fan_msg = 2 * H + E
    return (
        _uniform(ks[0], (H, 2 * H), fan_msg),   # [W1 | W2]  (h[j], h[i])
        _uniform(ks[1], (E, H), fan_msg),       # W3         (e[i,j])
        _uniform(ks[2], (1, H), fan_msg),       # b_m
        _uniform(ks[3], (H, 3 * H), H),         # [W_ir | W_iz | W_in]
        _uniform(ks[4], (H, 3 * H), H),         # [W_hr | W_hz | W_hn]
        _uniform(ks[5], (1, 3 * H), H),         # [b_ir | b_iz | b_in]
        _uniform(ks[6], (1, 3 * H), H),         # [b_hr | b_hz | b_hn]
    )


# --------------------------------- main ---------------------------------------


if __name__ == "__main__":
    B, N, H, E = 2, 8, 32, 8

    key = jax.random.PRNGKey(0)
    k_h, k_e, k_adj, k_p = jax.random.split(key, 4)

    h = jax.random.normal(k_h, (B, N, H), jnp.float32)
    e = jax.random.normal(k_e, (B, N, N, E), jnp.float32)
    adj = jax.random.bernoulli(k_adj, 0.5, (B, N, N)).astype(jnp.float32)

    params = init_mpnn_layer_params(k_p, H, E)

    for use_act in (False, True):
        new_h, e_out, adj_out = mpnn_layer(h, e, adj, params,
                                           use_activation=use_act)
        new_h = jax.block_until_ready(new_h)
        ref = jax.block_until_ready(_mpnn_layer_ref(h, e, adj, params, use_act))
        np.testing.assert_allclose(np.asarray(new_h), np.asarray(ref),
                                   rtol=1e-4, atol=1e-4)
        assert new_h.shape == (B, N, H)
        assert e_out.shape == e.shape and adj_out.shape == adj.shape

    print("KERNEL_OK")
</pallas_src>

<mosaic_0001>
module attributes {stable_mosaic.version = 11 : i64} {
  func.func @mpnn_layer_kernel(%arg0: i32, %arg1: memref<2x8x32xf32, #tpu.memory_space<vmem>>, %arg2: memref<2x8x8x8xf32, #tpu.memory_space<vmem>>, %arg3: memref<2x8x8xf32, #tpu.memory_space<vmem>>, %arg4: memref<32x64xf32, #tpu.memory_space<vmem>>, %arg5: memref<8x32xf32, #tpu.memory_space<vmem>>, %arg6: memref<1x32xf32, #tpu.memory_space<vmem>>, %arg7: memref<32x96xf32, #tpu.memory_space<vmem>>, %arg8: memref<32x96xf32, #tpu.memory_space<vmem>>, %arg9: memref<1x96xf32, #tpu.memory_space<vmem>>, %arg10: memref<1x96xf32, #tpu.memory_space<vmem>>, %arg11: memref<2x8x32xf32, #tpu.memory_space<vmem>>) attributes {dimension_semantics = [#tpu.dimension_semantics<parallel>], iteration_bounds = array<i64: 1>, scalar_prefetch = 0 : i64, scratch_operands = 0 : i64, tpu.core_type = #tpu.core_type<tc>, window_params = [{transform_indices = @transform_0, window_bounds = array<i64: 2, 8, 32>}, {transform_indices = @transform_1, window_bounds = array<i64: 2, 8, 8, 8>}, {transform_indices = @transform_2, window_bounds = array<i64: 2, 8, 8>}, {pipeline_mode = #tpu.pipeline_mode<synchronous>, transform_indices = @transform_3, window_bounds = array<i64: 32, 64>}, {pipeline_mode = #tpu.pipeline_mode<synchronous>, transform_indices = @transform_4, window_bounds = array<i64: 8, 32>}, {pipeline_mode = #tpu.pipeline_mode<synchronous>, transform_indices = @transform_5, window_bounds = array<i64: 1, 32>}, {pipeline_mode = #tpu.pipeline_mode<synchronous>, transform_indices = @transform_6, window_bounds = array<i64: 32, 96>}, {pipeline_mode = #tpu.pipeline_mode<synchronous>, transform_indices = @transform_7, window_bounds = array<i64: 32, 96>}, {pipeline_mode = #tpu.pipeline_mode<synchronous>, transform_indices = @transform_8, window_bounds = array<i64: 1, 96>}, {pipeline_mode = #tpu.pipeline_mode<synchronous>, transform_indices = @transform_9, window_bounds = array<i64: 1, 96>}, {transform_indices = @transform_10, window_bounds = array<i64: 2, 8, 32>}]} {
    %c0 = arith.constant 0 : index
    %c0_0 = arith.constant 0 : index
    %c0_1 = arith.constant 0 : index
    %0 = vector.load %arg1[%c0, %c0_0, %c0_1] : memref<2x8x32xf32, #tpu.memory_space<vmem>>, vector<2x8x32xf32>
    %c0_2 = arith.constant 0 : index
    %c0_3 = arith.constant 0 : index
    %c0_4 = arith.constant 0 : index
    %1 = vector.load %arg3[%c0_2, %c0_3, %c0_4] : memref<2x8x8xf32, #tpu.memory_space<vmem>>, vector<2x8x8xf32>
    %c0_5 = arith.constant 0 : index
    %c0_6 = arith.constant 0 : index
    %c0_7 = arith.constant 0 : index
    %c0_8 = arith.constant 0 : index
    %2 = vector.load %arg2[%c0_5, %c0_6, %c0_7, %c0_8] : memref<2x8x8x8xf32, #tpu.memory_space<vmem>>, vector<2x8x8x8xf32>
    %3 = vector.shape_cast %0 : vector<2x8x32xf32> to vector<16x32xf32>
    %c0_9 = arith.constant 0 : index
    %c0_10 = arith.constant 0 : index
    %4 = vector.load %arg4[%c0_9, %c0_10] : memref<32x64xf32, #tpu.memory_space<vmem>>, vector<32x64xf32>
    %cst = arith.constant dense<0.000000e+00> : vector<16x64xf32>
    %5 = tpu.matmul %3, %4, %cst {dimension_numbers = #tpu.dot_dimension_numbers<[1], [0], [0], [1], [0, 0, 1, 1], [], []>} : vector<16x32xf32>, vector<32x64xf32>, vector<16x64xf32> -> vector<16x64xf32>
    %6 = vector.extract_strided_slice %5 {offsets = [0, 0], sizes = [16, 32], strides = [1, 1]} : vector<16x64xf32> to vector<16x32xf32>
    %7 = vector.shape_cast %6 : vector<16x32xf32> to vector<2x8x32xf32>
    %8 = vector.extract_strided_slice %5 {offsets = [0, 32], sizes = [16, 32], strides = [1, 1]} : vector<16x64xf32> to vector<16x32xf32>
    %cst_11 = arith.constant dense<0.000000e+00> : vector<2x8xf32>
    %9 = vector.multi_reduction <add>, %1, %cst_11 [2] : vector<2x8x8xf32> to vector<2x8xf32>
    %10 = vector.shape_cast %9 : vector<2x8xf32> to vector<2x8x1xf32>
    %11 = vector.shape_cast %10 : vector<2x8x1xf32> to vector<16x1xf32>
    %12 = vector.shape_cast %1 : vector<2x8x8xf32> to vector<2x8x8x1xf32>
    %13 = vector.broadcast %12 : vector<2x8x8x1xf32> to vector<2x8x8x8xf32>
    %14 = arith.mulf %13, %2 : vector<2x8x8x8xf32>
    %cst_12 = arith.constant dense<0.000000e+00> : vector<2x8x8xf32>
    %15 = vector.multi_reduction <add>, %14, %cst_12 [2] : vector<2x8x8x8xf32> to vector<2x8x8xf32>
    %16 = vector.shape_cast %15 : vector<2x8x8xf32> to vector<16x8xf32>
    "tpu.trace_start"() <{level = 10 : i32, message = "bij,bjh->bih"}> : () -> ()
    %cst_13 = arith.constant dense<0.000000e+00> : vector<2x8x32xf32>
    %17 = tpu.matmul %1, %7, %cst_13 {dimension_numbers = #tpu.dot_dimension_numbers<[2], [1], [1], [2], [0, 0, 0, 1, 1, 2], [0], [0]>} : vector<2x8x8xf32>, vector<2x8x32xf32>, vector<2x8x32xf32> -> vector<2x8x32xf32>
    "tpu.trace_stop"() : () -> ()
    %18 = vector.shape_cast %17 : vector<2x8x32xf32> to vector<16x32xf32>
    %19 = vector.broadcast %11 : vector<16x1xf32> to vector<16x32xf32>
    %20 = arith.mulf %19, %8 : vector<16x32xf32>
    %21 = arith.addf %18, %20 : vector<16x32xf32>
    %c0_14 = arith.constant 0 : index
    %c0_15 = arith.constant 0 : index
    %22 = vector.load %arg5[%c0_14, %c0_15] : memref<8x32xf32, #tpu.memory_space<vmem>>, vector<8x32xf32>
    %cst_16 = arith.constant dense<0.000000e+00> : vector<16x32xf32>
    %23 = tpu.matmul %16, %22, %cst_16 {dimension_numbers = #tpu.dot_dimension_numbers<[1], [0], [0], [1], [0, 0, 1, 1], [], []>} : vector<16x8xf32>, vector<8x32xf32>, vector<16x32xf32> -> vector<16x32xf32>
    %24 = arith.addf %21, %23 : vector<16x32xf32>
    %c0_17 = arith.constant 0 : index
    %c0_18 = arith.constant 0 : index
    %25 = vector.load %arg6[%c0_17, %c0_18] : memref<1x32xf32, #tpu.memory_space<vmem>>, vector<1x32xf32>
    %26 = vector.broadcast %11 : vector<16x1xf32> to vector<16x32xf32>
    %27 = vector.broadcast %25 : vector<1x32xf32> to vector<16x32xf32>
    %28 = arith.mulf %26, %27 : vector<16x32xf32>
    %29 = arith.addf %24, %28 : vector<16x32xf32>
    %cst_19 = arith.constant 1.250000e-01 : f32
    %30 = vector.broadcast %cst_19 : f32 to vector<16x32xf32>
    %31 = arith.mulf %29, %30 : vector<16x32xf32>
    %c0_20 = arith.constant 0 : index
    %c0_21 = arith.constant 0 : index
    %32 = vector.load %arg7[%c0_20, %c0_21] : memref<32x96xf32, #tpu.memory_space<vmem>>, vector<32x96xf32>
    %cst_22 = arith.constant dense<0.000000e+00> : vector<16x96xf32>
    %33 = tpu.matmul %3, %32, %cst_22 {dimension_numbers = #tpu.dot_dimension_numbers<[1], [0], [0], [1], [0, 0, 1, 1], [], []>} : vector<16x32xf32>, vector<32x96xf32>, vector<16x96xf32> -> vector<16x96xf32>
    %c0_23 = arith.constant 0 : index
    %c0_24 = arith.constant 0 : index
    %34 = vector.load %arg9[%c0_23, %c0_24] : memref<1x96xf32, #tpu.memory_space<vmem>>, vector<1x96xf32>
    %35 = vector.broadcast %34 : vector<1x96xf32> to vector<16x96xf32>
    %36 = arith.addf %33, %35 : vector<16x96xf32>
    %c0_25 = arith.constant 0 : index
    %c0_26 = arith.constant 0 : index
    %37 = vector.load %arg8[%c0_25, %c0_26] : memref<32x96xf32, #tpu.memory_space<vmem>>, vector<32x96xf32>
    %cst_27 = arith.constant dense<0.000000e+00> : vector<16x96xf32>
    %38 = tpu.matmul %31, %37, %cst_27 {dimension_numbers = #tpu.dot_dimension_numbers<[1], [0], [0], [1], [0, 0, 1, 1], [], []>} : vector<16x32xf32>, vector<32x96xf32>, vector<16x96xf32> -> vector<16x96xf32>
    %c0_28 = arith.constant 0 : index
    %c0_29 = arith.constant 0 : index
    %39 = vector.load %arg10[%c0_28, %c0_29] : memref<1x96xf32, #tpu.memory_space<vmem>>, vector<1x96xf32>
    %40 = vector.broadcast %39 : vector<1x96xf32> to vector<16x96xf32>
    %41 = arith.addf %38, %40 : vector<16x96xf32>
    %42 = vector.extract_strided_slice %36 {offsets = [0, 0], sizes = [16, 32], strides = [1, 1]} : vector<16x96xf32> to vector<16x32xf32>
    %43 = vector.extract_strided_slice %41 {offsets = [0, 0], sizes = [16, 32], strides = [1, 1]} : vector<16x96xf32> to vector<16x32xf32>
    %44 = arith.addf %42, %43 : vector<16x32xf32>
    %45 = arith.negf %44 : vector<16x32xf32>
    %46 = math.exp %45 : vector<16x32xf32>
    %cst_30 = arith.constant 1.000000e+00 : f32
    %47 = vector.broadcast %cst_30 : f32 to vector<16x32xf32>
    %48 = arith.addf %47, %46 : vector<16x32xf32>
    %49 = arith.divf %47, %48 : vector<16x32xf32>
    %50 = vector.extract_strided_slice %36 {offsets = [0, 32], sizes = [16, 32], strides = [1, 1]} : vector<16x96xf32> to vector<16x32xf32>
    %51 = vector.extract_strided_slice %41 {offsets = [0, 32], sizes = [16, 32], strides = [1, 1]} : vector<16x96xf32> to vector<16x32xf32>
    %52 = arith.addf %50, %51 : vector<16x32xf32>
    %53 = arith.negf %52 : vector<16x32xf32>
    %54 = math.exp %53 : vector<16x32xf32>
    %cst_31 = arith.constant 1.000000e+00 : f32
    %55 = vector.broadcast %cst_31 : f32 to vector<16x32xf32>
    %56 = arith.addf %55, %54 : vector<16x32xf32>
    %57 = arith.divf %55, %56 : vector<16x32xf32>
    %58 = vector.extract_strided_slice %36 {offsets = [0, 64], sizes = [16, 32], strides = [1, 1]} : vector<16x96xf32> to vector<16x32xf32>
    %59 = vector.extract_strided_slice %41 {offsets = [0, 64], sizes = [16, 32], strides = [1, 1]} : vector<16x96xf32> to vector<16x32xf32>
    %60 = arith.mulf %49, %59 : vector<16x32xf32>
    %61 = arith.addf %58, %60 : vector<16x32xf32>
    %62 = math.tanh %61 : vector<16x32xf32>
    %cst_32 = arith.constant 1.000000e+00 : f32
    %63 = vector.broadcast %cst_32 : f32 to vector<16x32xf32>
    %64 = arith.subf %63, %57 : vector<16x32xf32>
    %65 = arith.mulf %64, %62 : vector<16x32xf32>
    %66 = arith.mulf %57, %31 : vector<16x32xf32>
    %67 = arith.addf %65, %66 : vector<16x32xf32>
    %68 = vector.shape_cast %67 : vector<16x32xf32> to vector<2x8x32xf32>
    %c0_33 = arith.constant 0 : index
    %c0_34 = arith.constant 0 : index
    %c0_35 = arith.constant 0 : index
    %69 = vector.load %arg11[%c0_33, %c0_34, %c0_35] : memref<2x8x32xf32, #tpu.memory_space<vmem>>, vector<2x8x32xf32>
    tpu.vector_store %arg11[%c0_33, %c0_34, %c0_35], %68 {strides = array<i32>} : memref<2x8x32xf32, #tpu.memory_space<vmem>>, vector<2x8x32xf32>,
    return
  }
  func.func @transform_0(%arg0: i32) -> (i32, i32, i32) {
    %c0_i32 = arith.constant 0 : i32
    %c0_i32_0 = arith.constant 0 : i32
    %c0_i32_1 = arith.constant 0 : i32
    return %arg0, %c0_i32, %c0_i32_0 : i32, i32, i32
  }
  func.func @transform_1(%arg0: i32) -> (i32, i32, i32, i32) {
    %c0_i32 = arith.constant 0 : i32
    %c0_i32_0 = arith.constant 0 : i32
    %c0_i32_1 = arith.constant 0 : i32
    %c0_i32_2 = arith.constant 0 : i32
    return %arg0, %c0_i32, %c0_i32_0, %c0_i32_1 : i32, i32, i32, i32
  }
  func.func @transform_2(%arg0: i32) -> (i32, i32, i32) {
    %c0_i32 = arith.constant 0 : i32
    %c0_i32_0 = arith.constant 0 : i32
    %c0_i32_1 = arith.constant 0 : i32
    return %arg0, %c0_i32, %c0_i32_0 : i32, i32, i32
  }
  func.func @transform_3(%arg0: i32) -> (i32, i32) {
    %c0_i32 = arith.constant 0 : i32
    %c0_i32_0 = arith.constant 0 : i32
    %c0_i32_1 = arith.constant 0 : i32
    return %c0_i32, %c0_i32_0 : i32, i32
  }
  func.func @transform_4(%arg0: i32) -> (i32, i32) {
    %c0_i32 = arith.constant 0 : i32
    %c0_i32_0 = arith.constant 0 : i32
    %c0_i32_1 = arith.constant 0 : i32
    return %c0_i32, %c0_i32_0 : i32, i32
  }
  func.func @transform_5(%arg0: i32) -> (i32, i32) {
    %c0_i32 = arith.constant 0 : i32
    %c0_i32_0 = arith.constant 0 : i32
    %c0_i32_1 = arith.constant 0 : i32
    return %c0_i32, %c0_i32_0 : i32, i32
  }
  func.func @transform_6(%arg0: i32) -> (i32, i32) {
    %c0_i32 = arith.constant 0 : i32
    %c0_i32_0 = arith.constant 0 : i32
    %c0_i32_1 = arith.constant 0 : i32
    return %c0_i32, %c0_i32_0 : i32, i32
  }
  func.func @transform_7(%arg0: i32) -> (i32, i32) {
    %c0_i32 = arith.constant 0 : i32
    %c0_i32_0 = arith.constant 0 : i32
    %c0_i32_1 = arith.constant 0 : i32
    return %c0_i32, %c0_i32_0 : i32, i32
  }
  func.func @transform_8(%arg0: i32) -> (i32, i32) {
    %c0_i32 = arith.constant 0 : i32
    %c0_i32_0 = arith.constant 0 : i32
    %c0_i32_1 = arith.constant 0 : i32
    return %c0_i32, %c0_i32_0 : i32, i32
  }
  func.func @transform_9(%arg0: i32) -> (i32, i32) {
    %c0_i32 = arith.constant 0 : i32
    %c0_i32_0 = arith.constant 0 : i32
    %c0_i32_1 = arith.constant 0 : i32
    return %c0_i32, %c0_i32_0 : i32, i32
  }
  func.func @transform_10(%arg0: i32) -> (i32, i32, i32) {
    %c0_i32 = arith.constant 0 : i32
    %c0_i32_0 = arith.constant 0 : i32
    %c0_i32_1 = arith.constant 0 : i32
    return %arg0, %c0_i32, %c0_i32_0 : i32, i32, i32
  }
}

</mosaic_0001>

<llo_original>
// kernel: tpu_custom_call.1
$region0: #{tpu_custom_call.1}
  #allocation0 [shape = 'u32[]', space=smem, size = 0x4, offset = 0x4, fixed_abs, tag = 'smem constant byte address 0x4 - core index']
  #allocation1 [shape = 'u32[72,128]{1,0:T(1,128)}', space=vmem, size = 0x9000, scoped, tag = 'internal scratch']
  %s0 = inlined_call_operand.hbm [shape: f32[2,8,32], index: 0, kind: input, shape index: {}]
  %s1 = inlined_call_operand.hbm [shape: f32[2,8,8,8], index: 1, kind: input, shape index: {}]
  %s2 = inlined_call_operand.hbm [shape: f32[2,8,8], index: 2, kind: input, shape index: {}]
  %s3 = inlined_call_operand.hbm [shape: f32[32,64], index: 3, kind: input, shape index: {}]
  %s4 = inlined_call_operand.hbm [shape: f32[8,32], index: 4, kind: input, shape index: {}]
  %s5 = inlined_call_operand.vmem [shape: f32[1,32], index: 5, kind: input, shape index: {}]
  %s6 = inlined_call_operand.hbm [shape: f32[32,96], index: 6, kind: input, shape index: {}]
  %s7 = inlined_call_operand.hbm [shape: f32[32,96], index: 7, kind: input, shape index: {}]
  %s8 = inlined_call_operand.vmem [shape: f32[1,96], index: 8, kind: input, shape index: {}]
  %s9 = inlined_call_operand.vmem [shape: f32[1,96], index: 9, kind: input, shape index: {}]
  %s10 = inlined_call_operand.hbm [shape: f32[2,8,32], index: 10, kind: output, shape index: {}]
  %s11 = sld [smem:[#allocation0]]
  $region78: #{tpu_custom_call.1} parent=0
    _
  %s13 = ssub.s32 1, %s11
  %s14 = scalar_select 0, %s13, %s11
  $region1: #{tpu_custom_call.1} parent=0
    #allocation2 [shape = 'u8[8192]{0}', space=vmem, size = 0x2000, scoped, tag = 'input window, operand 0, single buffered']
    #allocation3 [shape = 's32[1]{0}', space=sflag, size = 0x4, scoped, tag = 'scoped memory for tpu_custom_call.1']
    #allocation4 [shape = 's32[1]{0}', space=sflag, size = 0x4, scoped, tag = 'scoped memory for tpu_custom_call.1']
    #allocation5 [shape = 'u8[65536]{0}', space=vmem, size = 0x10000, scoped, tag = 'input window, operand 1, single buffered']
    #allocation6 [shape = 's32[1]{0}', space=sflag, size = 0x4, scoped, tag = 'scoped memory for tpu_custom_call.1']
    #allocation7 [shape = 'u8[8192]{0}', space=vmem, size = 0x2000, scoped, tag = 'input window, operand 2, single buffered']
    #allocation8 [shape = 'u8[16384]{0}', space=vmem, size = 0x4000, scoped, tag = 'input window, operand 3, single buffered']
    #allocation9 [shape = 's32[1]{0}', space=sflag, size = 0x4, scoped, tag = 'scoped memory for tpu_custom_call.1']
    #allocation10 [shape = 'u8[4096]{0}', space=vmem, size = 0x1000, scoped, tag = 'input window, operand 4, single buffered']
    #allocation11 [shape = 'u8[16384]{0}', space=vmem, size = 0x4000, scoped, tag = 'input window, operand 6, single buffered']
    #allocation12 [shape = 's32[1]{0}', space=sflag, size = 0x4, scoped, tag = 'scoped memory for tpu_custom_call.1']
    #allocation13 [shape = 'u8[16384]{0}', space=vmem, size = 0x4000, scoped, tag = 'input window, operand 7, single buffered']
    #allocation14 [shape = 'u8[8192]{0}', space=vmem, size = 0x2000, scoped, tag = 'output window, operand 0, single buffered']
    %15 = vsyncpa [#allocation3], 0
    %16 = vsyncpa [#allocation6], 0
    %17 = vsyncpa [#allocation9], 0
    %18 = vsyncpa [#allocation12], 0
    %19 = vsyncpa [#allocation4], 0
    // Predicated region
    $region2: #{tpu_custom_call.1} parent=1 // pred_check
      _
    $region3: #{tpu_custom_call.1} parent=1 // pred_check_branch
      %21 = sbr.rel (0) target = $region5
    $region4: #{tpu_custom_call.1} parent=1 // pred_region
      %23 = vsyncadd [#allocation3], 0
      %s24 = sshll.u32 %s0, 4
      %s25 = int_to_ptr.hbm [resolvable:$true] %s24
      %s26 = sshll.u32 [#allocation2], 4
      %s27 = int_to_ptr.vmem [resolvable:$true] %s26
      %32 = dma.hbm_to_vmem [thread:$0]  %s25, 256, %s27, [#allocation3], 128, 128, 8
    $region5: #{tpu_custom_call.1} parent=1 // pred_fallthru
      _
    // Predicated region
    $region6: #{tpu_custom_call.1} parent=1 // pred_check
      _
    $region7: #{tpu_custom_call.1} parent=1 // pred_check_branch
      %34 = sbr.rel (0) target = $region9
    $region8: #{tpu_custom_call.1} parent=1 // pred_region
      %36 = vsyncadd [#allocation6], 0
      %s37 = sshll.u32 %s1, 4
      %s38 = int_to_ptr.hbm [resolvable:$true] %s37
      %s39 = sshll.u32 [#allocation5], 4
      %s40 = int_to_ptr.vmem [resolvable:$true] %s39
      %45 = dma.hbm_to_vmem [thread:$0]  %s38, 2048, %s40, [#allocation6], 128, 128, 8
    $region9: #{tpu_custom_call.1} parent=1 // pred_fallthru
      _
    // Predicated region
    $region10: #{tpu_custom_call.1} parent=1 // pred_check
      _
    $region11: #{tpu_custom_call.1} parent=1 // pred_check_branch
      %47 = sbr.rel (0) target = $region13
    $region12: #{tpu_custom_call.1} parent=1 // pred_region
      %49 = vsyncadd [#allocation6], 0
      %s50 = sshll.u32 %s2, 4
      %s51 = int_to_ptr.hbm [resolvable:$true] %s50
      %s52 = sshll.u32 [#allocation7], 4
      %s53 = int_to_ptr.vmem [resolvable:$true] %s52
      %58 = dma.hbm_to_vmem [thread:$0]  %s51, 256, %s53, [#allocation6], 128, 128, 8
    $region13: #{tpu_custom_call.1} parent=1 // pred_fallthru
      _
    // Predicated region
    $region14: #{tpu_custom_call.1} parent=1 // pred_check
      _
    $region15: #{tpu_custom_call.1} parent=1 // pred_check_branch
      %60 = sbr.rel (0) target = $region17
    $region16: #{tpu_custom_call.1} parent=1 // pred_region
      %62 = vsyncadd [#allocation9], 0
      %s63 = sshll.u32 %s3, 4
      %s64 = int_to_ptr.hbm [resolvable:$true] %s63
      %s65 = sshll.u32 [#allocation8], 4
      %s66 = int_to_ptr.vmem [resolvable:$true] %s65
      %71 = dma.hbm_to_vmem [thread:$0]  %s64, 512, %s66, [#allocation9], 128, 128, 8
    $region17: #{tpu_custom_call.1} parent=1 // pred_fallthru
      _
    // Predicated region
    $region18: #{tpu_custom_call.1} parent=1 // pred_check
      _
    $region19: #{tpu_custom_call.1} parent=1 // pred_check_branch
      %73 = sbr.rel (0) target = $region21
    $region20: #{tpu_custom_call.1} parent=1 // pred_region
      %75 = vsyncadd [#allocation9], 0
      %s77 = sshll.u32 %s4, 4
      %s78 = int_to_ptr.hbm [resolvable:$true] %s77
      %s79 = sshll.u32 [#allocation10], 4
      %s80 = int_to_ptr.vmem [resolvable:$true] %s79
      %82 = dma.hbm_to_vmem [thread:$0]  %s78, 128, %s80, [#allocation9]
    $region21: #{tpu_custom_call.1} parent=1 // pred_fallthru
      _
    // Predicated region
    $region22: #{tpu_custom_call.1} parent=1 // pred_check
      _
    $region23: #{tpu_custom_call.1} parent=1 // pred_check_branch
      %84 = sbr.rel (0) target = $region25
    $region24: #{tpu_custom_call.1} parent=1 // pred_region
      _
    $region25: #{tpu_custom_call.1} parent=1 // pred_fallthru
      _
    // Predicated region
    $region26: #{tpu_custom_call.1} parent=1 // pred_check
      _
    $region27: #{tpu_custom_call.1} parent=1 // pred_check_branch
      %86 = sbr.rel (0) target = $region29
    $region28: #{tpu_custom_call.1} parent=1 // pred_region
      %88 = vsyncadd [#allocation12], 0
      %s89 = sshll.u32 %s6, 4
      %s90 = int_to_ptr.hbm [resolvable:$true] %s89
      %s91 = sshll.u32 [#allocation11], 4
      %s92 = int_to_ptr.vmem [resolvable:$true] %s91
      %97 = dma.hbm_to_vmem [thread:$0]  %s90, 512, %s92, [#allocation12], 128, 128, 8
    $region29: #{tpu_custom_call.1} parent=1 // pred_fallthru
      _
    // Predicated region
    $region30: #{tpu_custom_call.1} parent=1 // pred_check
      _
    $region31: #{tpu_custom_call.1} parent=1 // pred_check_branch
      %99 = sbr.rel (0) target = $region33
    $region32: #{tpu_custom_call.1} parent=1 // pred_region
      %101 = vsyncadd [#allocation12], 0
      %s102 = sshll.u32 %s7, 4
      %s103 = int_to_ptr.hbm [resolvable:$true] %s102
      %s104 = sshll.u32 [#allocation13], 4
      %s105 = int_to_ptr.vmem [resolvable:$true] %s104
      %110 = dma.hbm_to_vmem [thread:$0]  %s103, 512, %s105, [#allocation12], 128, 128, 8
    $region33: #{tpu_custom_call.1} parent=1 // pred_fallthru
      _
    // Predicated region
    $region34: #{tpu_custom_call.1} parent=1 // pred_check
      _
    $region35: #{tpu_custom_call.1} parent=1 // pred_check_branch
      %112 = sbr.rel (0) target = $region37
    $region36: #{tpu_custom_call.1} parent=1 // pred_region
      _
    $region37: #{tpu_custom_call.1} parent=1 // pred_fallthru
      _
    // Predicated region
    $region38: #{tpu_custom_call.1} parent=1 // pred_check
      _
    $region39: #{tpu_custom_call.1} parent=1 // pred_check_branch
      %114 = sbr.rel (0) target = $region41
    $region40: #{tpu_custom_call.1} parent=1 // pred_region
      _
    $region41: #{tpu_custom_call.1} parent=1 // pred_fallthru
      _
    // Predicated region
    $region42: #{tpu_custom_call.1} parent=1 // pred_check
      _
    $region43: #{tpu_custom_call.1} parent=1 // pred_check_branch
      %116 = sbr.rel (0) target = $region45
    $region44: #{tpu_custom_call.1} parent=1 // pred_region
      %118 = dma.done [#allocation3], 256
    $region45: #{tpu_custom_call.1} parent=1 // pred_fallthru
      _
    // Predicated region
    $region46: #{tpu_custom_call.1} parent=1 // pred_check
      _
    $region47: #{tpu_custom_call.1} parent=1 // pred_check_branch
      %120 = sbr.rel (0) target = $region49
    $region48: #{tpu_custom_call.1} parent=1 // pred_region
      %122 = dma.done [#allocation6], 2048
    $region49: #{tpu_custom_call.1} parent=1 // pred_fallthru
      _
    // Predicated region
    $region50: #{tpu_custom_call.1} parent=1 // pred_check
      _
    $region51: #{tpu_custom_call.1} parent=1 // pred_check_branch
      %124 = sbr.rel (0) target = $region53
    $region52: #{tpu_custom_call.1} parent=1 // pred_region
      %126 = dma.done [#allocation6], 256
    $region53: #{tpu_custom_call.1} parent=1 // pred_fallthru
      _
    // Predicated region
    $region54: #{tpu_custom_call.1} parent=1 // pred_check
      _
    $region55: #{tpu_custom_call.1} parent=1 // pred_check_branch
      %128 = sbr.rel (0) target = $region57
    $region56: #{tpu_custom_call.1} parent=1 // pred_region
      %130 = dma.done [#allocation9], 512
    $region57: #{tpu_custom_call.1} parent=1 // pred_fallthru
      _
    // Predicated region
    $region58: #{tpu_custom_call.1} parent=1 // pred_check
      _
    $region59: #{tpu_custom_call.1} parent=1 // pred_check_branch
      %132 = sbr.rel (0) target = $region61
    $region60: #{tpu_custom_call.1} parent=1 // pred_region
      %134 = dma.done [#allocation9], 128
    $region61: #{tpu_custom_call.1} parent=1 // pred_fallthru
      _
    // Predicated region
    $region62: #{tpu_custom_call.1} parent=1 // pred_check
      _
    $region63: #{tpu_custom_call.1} parent=1 // pred_check_branch
      %136 = sbr.rel (0) target = $region65
    $region64: #{tpu_custom_call.1} parent=1 // pred_region
      %138 = dma.done [#allocation12], 512
    $region65: #{tpu_custom_call.1} parent=1 // pred_fallthru
      _
    // Predicated region
    $region66: #{tpu_custom_call.1} parent=1 // pred_check
      _
    $region67: #{tpu_custom_call.1} parent=1 // pred_check_branch
      %140 = sbr.rel (0) target = $region69
    $region68: #{tpu_custom_call.1} parent=1 // pred_region
      %142 = dma.done [#allocation12], 512
    $region69: #{tpu_custom_call.1} parent=1 // pred_fallthru
      _
    %v143 = vld [vmem:[#allocation2] sm:$0xff]
    %v144 = vld [vmem:[#allocation2 + $0x8] sm:$0xff]
    %v145 = vld [vmem:[#allocation7] sm:$0xff]
    %v146 = vld [vmem:[#allocation7 + $0x8] sm:$0xff]
    %v147 = vld [vmem:[#allocation5] sm:$0xff]
    %v148 = vld [vmem:[#allocation5 + $0x8] sm:$0xff]
    %v149 = vld [vmem:[#allocation5 + $0x10] sm:$0xff]
    %v150 = vld [vmem:[#allocation5 + $0x18] sm:$0xff]
    %v151 = vld [vmem:[#allocation5 + $0x20] sm:$0xff]
    %v152 = vld [vmem:[#allocation5 + $0x28] sm:$0xff]
    %v153 = vld [vmem:[#allocation5 + $0x30] sm:$0xff]
    %v154 = vld [vmem:[#allocation5 + $0x38] sm:$0xff]
    %v155 = vld [vmem:[#allocation5 + $0x40] sm:$0xff]
    %v156 = vld [vmem:[#allocation5 + $0x48] sm:$0xff]
    %v157 = vld [vmem:[#allocation5 + $0x50] sm:$0xff]
    %v158 = vld [vmem:[#allocation5 + $0x58] sm:$0xff]
    %v159 = vld [vmem:[#allocation5 + $0x60] sm:$0xff]
    %v160 = vld [vmem:[#allocation5 + $0x68] sm:$0xff]
    %v161 = vld [vmem:[#allocation5 + $0x70] sm:$0xff]
    %v162 = vld [vmem:[#allocation5 + $0x78] sm:$0xff]
    %v163 = vld [vmem:[#allocation8] sm:$0xff]
    %v164 = vld [vmem:[#allocation8 + $0x8] sm:$0xff]
    %v165 = vld [vmem:[#allocation8 + $0x10] sm:$0xff]
    %v166 = vld [vmem:[#allocation8 + $0x18] sm:$0xff]
    %vm167 = vcmask 261120
    %v169 = vsel %vm167, %v143, 0
    %v172 = vsel %vm167, %v144, 0
    %174 = vmatpush.msra.mxu0 0.0
    %175 = vmatpush.msra.mxu0 0.0
    %176 = vmatpush.msra.mxu0 0.0
    %177 = vmatpush.msra.mxu0 0.0
    %178 = vmatpush.msra.mxu0 0.0
    %179 = vmatpush.msra.mxu0 0.0
    %180 = vmatpush.msra.mxu0 0.0
    %181 = vmatpush.msra.mxu0 0.0
    %182 = vmatpush.msra.mxu0 0.0
    %183 = vmatpush.msra.mxu0 0.0
    %184 = vmatpush.msra.mxu0 0.0
    %185 = vmatpush.msra.mxu0 0.0
    %186 = vmatpush.msra.mxu0 %v166
    %187 = vmatpush.msra.mxu0 %v165
    %188 = vmatpush.msra.mxu0 %v164
    %189 = vmatpush.msra.mxu0 %v163
    %190 = vmatmul.f32.gmra.mxu0 %v169
    %v191 = vpop.f32.mrf.mxu0
    %v192 = vadd.f32 0.0, %v191
    %193 = vmatmul.f32.gmra.mxu0 %v172
    %v194 = vpop.f32.mrf.mxu0
    %v195 = vadd.f32 0.0, %v194
    %196 = vdwg.mxu0
    %vm197 = vcmask 64512
    %v198 = vsel %vm197, %v145, 0.0
    %199 = vadd.xlane.f32.xlu0 %v198
    %v200 = vpop.xlane.xlu0 %199
    %v201 = vsel %vm197, %v146, 0.0
    %202 = vadd.xlane.f32.xlu0 %v201
    %v203 = vpop.xlane.xlu0 %202
    %v204 = vperm.slane %v145, 0
    %v205 = vlaneseq
    %v206 = vshrl.u32 %v205, 7
    %208 = vset.pattern.permute.xlu0 %v206
    %209 = vperm.xlu0 %208, %v204
    %v210 = vpop.permute.xlu0 %209
    %v211 = vperm.slane %v145, 1
    %v212 = vlaneseq
    %v213 = vshrl.u32 %v212, 7
    %215 = vset.pattern.permute.xlu0 %v213
    %216 = vperm.xlu0 %215, %v211
    %v217 = vpop.permute.xlu0 %216
    %v218 = vperm.slane %v145, 2
    %v219 = vlaneseq
    %v220 = vshrl.u32 %v219, 7
    %222 = vset.pattern.permute.xlu0 %v220
    %223 = vperm.xlu0 %222, %v218
    %v224 = vpop.permute.xlu0 %223
    %v225 = vperm.slane %v145, 3
    %v226 = vlaneseq
    %v227 = vshrl.u32 %v226, 7
    %229 = vset.pattern.permute.xlu0 %v227
    %230 = vperm.xlu0 %229, %v225
    %v231 = vpop.permute.xlu0 %230
    %v232 = vperm.slane %v145, 4
    %v233 = vlaneseq
    %v234 = vshrl.u32 %v233, 7
    %236 = vset.pattern.permute.xlu0 %v234
    %237 = vperm.xlu0 %236, %v232
    %v238 = vpop.permute.xlu0 %237
    %v239 = vperm.slane %v145, 5
    %v240 = vlaneseq
    %v241 = vshrl.u32 %v240, 7
    %243 = vset.pattern.permute.xlu0 %v241
    %244 = vperm.xlu0 %243, %v239
    %v245 = vpop.permute.xlu0 %244
    %v246 = vperm.slane %v145, 6
    %v247 = vlaneseq
    %v248 = vshrl.u32 %v247, 7
    %250 = vset.pattern.permute.xlu0 %v248
    %251 = vperm.xlu0 %250, %v246
    %v252 = vpop.permute.xlu0 %251
    %v253 = vperm.slane %v145, 7
    %v254 = vlaneseq
    %v255 = vshrl.u32 %v254, 7
    %257 = vset.pattern.permute.xlu0 %v255
    %258 = vperm.xlu0 %257, %v253
    %v259 = vpop.permute.xlu0 %258
    %v260 = vperm.slane %v146, 0
    %v261 = vlaneseq
    %v262 = vshrl.u32 %v261, 7
    %264 = vset.pattern.permute.xlu0 %v262
    %265 = vperm.xlu0 %264, %v260
    %v266 = vpop.permute.xlu0 %265
    %v267 = vperm.slane %v146, 1
    %v268 = vlaneseq
    %v269 = vshrl.u32 %v268, 7
    %271 = vset.pattern.permute.xlu0 %v269
    %272 = vperm.xlu0 %271, %v267
    %v273 = vpop.permute.xlu0 %272
    %v274 = vperm.slane %v146, 2
    %v275 = vlaneseq
    %v276 = vshrl.u32 %v275, 7
    %278 = vset.pattern.permute.xlu0 %v276
    %279 = vperm.xlu0 %278, %v274
    %v280 = vpop.permute.xlu0 %279
    %v281 = vperm.slane %v146, 3
    %v282 = vlaneseq
    %v283 = vshrl.u32 %v282, 7
    %285 = vset.pattern.permute.xlu0 %v283
    %286 = vperm.xlu0 %285, %v281
    %v287 = vpop.permute.xlu0 %286
    %v288 = vperm.slane %v146, 4
    %v289 = vlaneseq
    %v290 = vshrl.u32 %v289, 7
    %292 = vset.pattern.permute.xlu0 %v290
    %293 = vperm.xlu0 %292, %v288
    %v294 = vpop.permute.xlu0 %293
    %v295 = vperm.slane %v146, 5
    %v296 = vlaneseq
    %v297 = vshrl.u32 %v296, 7
    %299 = vset.pattern.permute.xlu0 %v297
    %300 = vperm.xlu0 %299, %v295
    %v301 = vpop.permute.xlu0 %300
    %v302 = vperm.slane %v146, 6
    %v303 = vlaneseq
    %v304 = vshrl.u32 %v303, 7
    %306 = vset.pattern.permute.xlu0 %v304
    %307 = vperm.xlu0 %306, %v302
    %v308 = vpop.permute.xlu0 %307
    %v309 = vperm.slane %v146, 7
    %v310 = vlaneseq
    %v311 = vshrl.u32 %v310, 7
    %313 = vset.pattern.permute.xlu0 %v311
    %314 = vperm.xlu0 %313, %v309
    %v315 = vpop.permute.xlu0 %314
    %v316 = vmul.f32 %v210, %v147
    %v317 = vmul.f32 %v217, %v148
    %v318 = vmul.f32 %v224, %v149
    %v319 = vmul.f32 %v231, %v150
    %v320 = vmul.f32 %v238, %v151
    %v321 = vmul.f32 %v245, %v152
    %v322 = vmul.f32 %v252, %v153
    %v323 = vmul.f32 %v259, %v154
    %v324 = vmul.f32 %v266, %v155
    %v325 = vmul.f32 %v273, %v156
    %v326 = vmul.f32 %v280, %v157
    %v327 = vmul.f32 %v287, %v158
    %v328 = vmul.f32 %v294, %v159
    %v329 = vmul.f32 %v301, %v160
    %v330 = vmul.f32 %v308, %v161
    %v331 = vmul.f32 %v315, %v162
    %v332 = vsel %vm197, %v316, 0.0
    %v333 = vrot.slane %v332, 4
    %v334 = vadd.f32 %v332, %v333
    %v335 = vrot.slane %v334, 2
    %v336 = vadd.f32 %v334, %v335
    %v337 = vrot.slane %v336, 1
    %v338 = vadd.f32 %v336, %v337
    %v339 = vsel %vm197, %v317, 0.0
    %v340 = vrot.slane %v339, 4
    %v341 = vadd.f32 %v339, %v340
    %v342 = vrot.slane %v341, 2
    %v343 = vadd.f32 %v341, %v342
    %v344 = vrot.slane %v343, 1
    %v345 = vadd.f32 %v343, %v344
    %v346 = vsel %vm197, %v318, 0.0
    %v347 = vrot.slane %v346, 4
    %v348 = vadd.f32 %v346, %v347
    %v349 = vrot.slane %v348, 2
    %v350 = vadd.f32 %v348, %v349
    %v351 = vrot.slane %v350, 1
    %v352 = vadd.f32 %v350, %v351
    %v353 = vsel %vm197, %v319, 0.0
    %v354 = vrot.slane %v353, 4
    %v355 = vadd.f32 %v353, %v354
    %v356 = vrot.slane %v355, 2
    %v357 = vadd.f32 %v355, %v356
    %v358 = vrot.slane %v357, 1
    %v359 = vadd.f32 %v357, %v358
    %v360 = vsel %vm197, %v320, 0.0
    %v361 = vrot.slane %v360, 4
    %v362 = vadd.f32 %v360, %v361
    %v363 = vrot.slane %v362, 2
    %v364 = vadd.f32 %v362, %v363
    %v365 = vrot.slane %v364, 1
    %v366 = vadd.f32 %v364, %v365
    %v367 = vsel %vm197, %v321, 0.0
    %v368 = vrot.slane %v367, 4
    %v369 = vadd.f32 %v367, %v368
    %v370 = vrot.slane %v369, 2
    %v371 = vadd.f32 %v369, %v370
    %v372 = vrot.slane %v371, 1
    %v373 = vadd.f32 %v371, %v372
    %v374 = vsel %vm197, %v322, 0.0
    %v375 = vrot.slane %v374, 4
    %v376 = vadd.f32 %v374, %v375
    %v377 = vrot.slane %v376, 2
    %v378 = vadd.f32 %v376, %v377
    %v379 = vrot.slane %v378, 1
    %v380 = vadd.f32 %v378, %v379
    %v381 = vsel %vm197, %v323, 0.0
    %v382 = vrot.slane %v381, 4
    %v383 = vadd.f32 %v381, %v382
    %v384 = vrot.slane %v383, 2
    %v385 = vadd.f32 %v383, %v384
    %v386 = vrot.slane %v385, 1
    %v387 = vadd.f32 %v385, %v386
    %v388 = vsel %vm197, %v324, 0.0
    %v389 = vrot.slane %v388, 4
    %v390 = vadd.f32 %v388, %v389
    %v391 = vrot.slane %v390, 2
    %v392 = vadd.f32 %v390, %v391
    %v393 = vrot.slane %v392, 1
    %v394 = vadd.f32 %v392, %v393
    %v395 = vsel %vm197, %v325, 0.0
    %v396 = vrot.slane %v395, 4
    %v397 = vadd.f32 %v395, %v396
    %v398 = vrot.slane %v397, 2
    %v399 = vadd.f32 %v397, %v398
    %v400 = vrot.slane %v399, 1
    %v401 = vadd.f32 %v399, %v400
    %v402 = vsel %vm197, %v326, 0.0
    %v403 = vrot.slane %v402, 4
    %v404 = vadd.f32 %v402, %v403
    %v405 = vrot.slane %v404, 2
    %v406 = vadd.f32 %v404, %v405
    %v407 = vrot.slane %v406, 1
    %v408 = vadd.f32 %v406, %v407
    %v409 = vsel %vm197, %v327, 0.0
    %v410 = vrot.slane %v409, 4
    %v411 = vadd.f32 %v409, %v410
    %v412 = vrot.slane %v411, 2
    %v413 = vadd.f32 %v411, %v412
    %v414 = vrot.slane %v413, 1
    %v415 = vadd.f32 %v413, %v414
    %v416 = vsel %vm197, %v328, 0.0
    %v417 = vrot.slane %v416, 4
    %v418 = vadd.f32 %v416, %v417
    %v419 = vrot.slane %v418, 2
    %v420 = vadd.f32 %v418, %v419
    %v421 = vrot.slane %v420, 1
    %v422 = vadd.f32 %v420, %v421
    %v423 = vsel %vm197, %v329, 0.0
    %v424 = vrot.slane %v423, 4
    %v425 = vadd.f32 %v423, %v424
    %v426 = vrot.slane %v425, 2
    %v427 = vadd.f32 %v425, %v426
    %v428 = vrot.slane %v427, 1
    %v429 = vadd.f32 %v427, %v428
    %v430 = vsel %vm197, %v330, 0.0
    %v431 = vrot.slane %v430, 4
    %v432 = vadd.f32 %v430, %v431
    %v433 = vrot.slane %v432, 2
    %v434 = vadd.f32 %v432, %v433
    %v435 = vrot.slane %v434, 1
    %v436 = vadd.f32 %v434, %v435
    %v437 = vsel %vm197, %v331, 0.0
    %v438 = vrot.slane %v437, 4
    %v439 = vadd.f32 %v437, %v438
    %v440 = vrot.slane %v439, 2
    %v441 = vadd.f32 %v439, %v440
    %v442 = vrot.slane %v441, 1
    %v443 = vadd.f32 %v441, %v442
    %v445 = vsel %vm197, %v145, 0
    %447 = vmatpush.msra.mxu0 0.0
    %448 = vmatpush.msra.mxu0 0.0
    %449 = vmatpush.msra.mxu0 0.0
    %450 = vmatpush.msra.mxu0 0.0
    %451 = vmatpush.msra.mxu0 0.0
    %452 = vmatpush.msra.mxu0 0.0
    %453 = vmatpush.msra.mxu0 0.0
    %454 = vmatpush.msra.mxu0 0.0
    %455 = vmatpush.msra.mxu0 0.0
    %456 = vmatpush.msra.mxu0 0.0
    %457 = vmatpush.msra.mxu0 0.0
    %458 = vmatpush.msra.mxu0 0.0
    %459 = vmatpush.msra.mxu0 0.0
    %460 = vmatpush.msra.mxu0 0.0
    %461 = vmatpush.msra.mxu0 0.0
    %462 = vmatpush.msra.mxu0 %v192
    %463 = vmatmul.f32.gmra.mxu0 %v445
    %v464 = vpop.f32.mrf.mxu0
    %v465 = vadd.f32 0.0, %v464
    %466 = vdwg.mxu0
    %v468 = vsel %vm197, %v146, 0
    %470 = vmatpush.msra.mxu0 0.0
    %471 = vmatpush.msra.mxu0 0.0
    %472 = vmatpush.msra.mxu0 0.0
    %473 = vmatpush.msra.mxu0 0.0
    %474 = vmatpush.msra.mxu0 0.0
    %475 = vmatpush.msra.mxu0 0.0
    %476 = vmatpush.msra.mxu0 0.0
    %477 = vmatpush.msra.mxu0 0.0
    %478 = vmatpush.msra.mxu0 0.0
    %479 = vmatpush.msra.mxu0 0.0
    %480 = vmatpush.msra.mxu0 0.0
    %481 = vmatpush.msra.mxu0 0.0
    %482 = vmatpush.msra.mxu0 0.0
    %483 = vmatpush.msra.mxu0 0.0
    %484 = vmatpush.msra.mxu0 0.0
    %485 = vmatpush.msra.mxu0 %v195
    %486 = vmatmul.f32.gmra.mxu0 %v468
    %v487 = vpop.f32.mrf.mxu0
    %v488 = vadd.f32 0.0, %v487
    %489 = vdwg.mxu0
    %v490 = vmul.f32 %v200, %v192
    %v491 = vmul.f32 %v203, %v195
    %494 = vrot.lane.b32.xlu0 %v490, 96
    %v495 = vpop.permute.xlu0 %494
    %496 = vrot.lane.b32.xlu0 %v491, 96
    %v497 = vpop.permute.xlu0 %496
    %v500 = vadd.f32 %v465, %v495
    %v501 = vadd.f32 %v488, %v497
    %v502 = vld [vmem:[#allocation10] sm:$0xff]
    %vm519 = vcmask 1041409
    %v520 = vsel %vm519, %v345, %v338
    %vm521 = vcmask 1042434
    %v522 = vsel %vm521, %v352, %v520
    %vm523 = vcmask 1043459
    %v524 = vsel %vm523, %v359, %v522
    %vm525 = vcmask 1044484
    %v526 = vsel %vm525, %v366, %v524
    %vm527 = vcmask 1045509
    %v528 = vsel %vm527, %v373, %v526
    %vm529 = vcmask 1046534
    %v530 = vsel %vm529, %v380, %v528
    %vm531 = vcmask 1047559
    %v532 = vsel %vm531, %v387, %v530
    %v533 = vsel %vm519, %v401, %v394
    %v534 = vsel %vm521, %v408, %v533
    %v535 = vsel %vm523, %v415, %v534
    %v536 = vsel %vm525, %v422, %v535
    %v537 = vsel %vm527, %v429, %v536
    %v538 = vsel %vm529, %v436, %v537
    %v539 = vsel %vm531, %v443, %v538
    %v540 = vsel %vm197, %v532, 0
    %v542 = vsel %vm197, %v539, 0
    %544 = vmatpush.msra.mxu0 0.0
    %545 = vmatpush.msra.mxu0 0.0
    %546 = vmatpush.msra.mxu0 0.0
    %547 = vmatpush.msra.mxu0 0.0
    %548 = vmatpush.msra.mxu0 0.0
    %549 = vmatpush.msra.mxu0 0.0
    %550 = vmatpush.msra.mxu0 0.0
    %551 = vmatpush.msra.mxu0 0.0
    %552 = vmatpush.msra.mxu0 0.0
    %553 = vmatpush.msra.mxu0 0.0
    %554 = vmatpush.msra.mxu0 0.0
    %555 = vmatpush.msra.mxu0 0.0
    %556 = vmatpush.msra.mxu0 0.0
    %557 = vmatpush.msra.mxu0 0.0
    %558 = vmatpush.msra.mxu0 0.0
    %559 = vmatpush.msra.mxu0 %v502
    %560 = vmatmul.f32.gmra.mxu0 %v540
    %v561 = vpop.f32.mrf.mxu0
    %v562 = vadd.f32 0.0, %v561
    %563 = vmatmul.f32.gmra.mxu0 %v542
    %v564 = vpop.f32.mrf.mxu0
    %v565 = vadd.f32 0.0, %v564
    %566 = vdwg.mxu0
    %v567 = vadd.f32 %v500, %v562
    %v568 = vadd.f32 %v501, %v565
    %v569 = vld [vmem:[%s5] sm:$0x1]
    %v571 = vperm.slane %v569, 0
    %v573 = vmul.f32 %v200, %v571
    %v574 = vmul.f32 %v203, %v571
    %v575 = vadd.f32 %v567, %v573
    %v576 = vadd.f32 %v568, %v574
    %v577 = vmul.f32 %v575, 0.125
    %v578 = vmul.f32 %v576, 0.125
    %v579 = vld [vmem:[#allocation11] sm:$0xff]
    %v580 = vld [vmem:[#allocation11 + $0x8] sm:$0xff]
    %v581 = vld [vmem:[#allocation11 + $0x10] sm:$0xff]
    %v582 = vld [vmem:[#allocation11 + $0x18] sm:$0xff]
    %v583 = vld [vmem:[%s8] sm:$0x1]
    %v585 = vperm.slane %v583, 0
    %587 = vmatpush.msra.mxu0 0.0
    %588 = vmatpush.msra.mxu0 0.0
    %589 = vmatpush.msra.mxu0 0.0
    %590 = vmatpush.msra.mxu0 0.0
    %591 = vmatpush.msra.mxu0 0.0
    %592 = vmatpush.msra.mxu0 0.0
    %593 = vmatpush.msra.mxu0 0.0
    %594 = vmatpush.msra.mxu0 0.0
    %595 = vmatpush.msra.mxu0 0.0
    %596 = vmatpush.msra.mxu0 0.0
    %597 = vmatpush.msra.mxu0 0.0
    %598 = vmatpush.msra.mxu0 0.0
    %599 = vmatpush.msra.mxu0 %v582
    %600 = vmatpush.msra.mxu0 %v581
    %601 = vmatpush.msra.mxu0 %v580
    %602 = vmatpush.msra.mxu0 %v579
    %603 = vmatmul.f32.gmra.mxu0 %v169
    %v604 = vpop.f32.mrf.mxu0
    %v605 = vadd.f32 %v585, %v604
    %606 = vmatmul.f32.gmra.mxu0 %v172
    %v607 = vpop.f32.mrf.mxu0
    %v608 = vadd.f32 %v585, %v607
    %609 = vdwg.mxu0
    %v610 = vld [vmem:[#allocation13] sm:$0xff]
    %v611 = vld [vmem:[#allocation13 + $0x8] sm:$0xff]
    %v612 = vld [vmem:[#allocation13 + $0x10] sm:$0xff]
    %v613 = vld [vmem:[#allocation13 + $0x18] sm:$0xff]
    %v614 = vld [vmem:[%s9] sm:$0x1]
    %v616 = vperm.slane %v614, 0
    %v619 = vsel %vm167, %v577, 0
    %v622 = vsel %vm167, %v578, 0
    %624 = vmatpush.msra.mxu0 0.0
    %625 = vmatpush.msra.mxu0 0.0
    %626 = vmatpush.msra.mxu0 0.0
    %627 = vmatpush.msra.mxu0 0.0
    %628 = vmatpush.msra.mxu0 0.0
    %629 = vmatpush.msra.mxu0 0.0
    %630 = vmatpush.msra.mxu0 0.0
    %631 = vmatpush.msra.mxu0 0.0
    %632 = vmatpush.msra.mxu0 0.0
    %633 = vmatpush.msra.mxu0 0.0
    %634 = vmatpush.msra.mxu0 0.0
    %635 = vmatpush.msra.mxu0 0.0
    %636 = vmatpush.msra.mxu0 %v613
    %637 = vmatpush.msra.mxu0 %v612
    %638 = vmatpush.msra.mxu0 %v611
    %639 = vmatpush.msra.mxu0 %v610
    %640 = vmatmul.f32.gmra.mxu0 %v619
    %v641 = vpop.f32.mrf.mxu0
    %v642 = vadd.f32 %v616, %v641
    %643 = vmatmul.f32.gmra.mxu0 %v622
    %v644 = vpop.f32.mrf.mxu0
    %v645 = vadd.f32 %v616, %v644
    %646 = vdwg.mxu0
    %v647 = vadd.f32 %v605, %v642
    %v648 = vadd.f32 %v608, %v645
    %v649 = vxor.u32 %v647, 2147483648
    %v650 = vxor.u32 %v648, 2147483648
    %v651 = vmul.f32 %v649, 1.442695
    %v652 = vpow.pop %v651
    %v653 = vmul.f32 %v650, 1.442695
    %v654 = vpow.pop %v653
    %v655 = vadd.f32 %v652, 1.0
    %v656 = vadd.f32 %v654, 1.0
    %v657 = vrcp.pop %v655
    %v658 = vmul.f32 %v655, %v657
    %v659 = vsub.f32 1.0, %v658
    %v660 = vmul.f32 %v657, %v659
    %v661 = vadd.f32 %v657, %v660
    %vm662 = vweird.f32 %v655
    %vm663 = vweird.f32 %v657
    %vm664 = vmor %vm662, %vm663
    %v665 = vsel %vm664, %v657, %v661
    %v666 = vand.u32 2147483647, %v655
    %vm667 = vcmp.eq.f32.partialorder %v666, 8.507059e+37
    %v668 = vand.u32 %v655, 2147483648
    %v669 = vor.u32 1.1754944e-38, %v668
    %v670 = vsel %vm667, %v669, %v665
    %v671 = vmul.f32 1.0, %v670
    %v672 = vrcp.pop %v656
    %v673 = vmul.f32 %v656, %v672
    %v674 = vsub.f32 1.0, %v673
    %v675 = vmul.f32 %v672, %v674
    %v676 = vadd.f32 %v672, %v675
    %vm677 = vweird.f32 %v656
    %vm678 = vweird.f32 %v672
    %vm679 = vmor %vm677, %vm678
    %v680 = vsel %vm679, %v672, %v676
    %v681 = vand.u32 2147483647, %v656
    %vm682 = vcmp.eq.f32.partialorder %v681, 8.507059e+37
    %v683 = vand.u32 %v656, 2147483648
    %v684 = vor.u32 1.1754944e-38, %v683
    %v685 = vsel %vm682, %v684, %v680
    %v686 = vmul.f32 1.0, %v685
    %689 = vrot.lane.b32.xlu0 %v642, 64
    %v690 = vpop.permute.xlu0 %689
    %691 = vrot.lane.b32.xlu0 %v645, 64
    %v692 = vpop.permute.xlu0 %691
    %v695 = vmul.f32 %v671, %v690
    %v696 = vmul.f32 %v686, %v692
    %699 = vrot.lane.b32.xlu0 %v695, 64
    %v700 = vpop.permute.xlu0 %699
    %701 = vrot.lane.b32.xlu0 %v696, 64
    %v702 = vpop.permute.xlu0 %701
    %v705 = vadd.f32 %v605, %v700
    %v706 = vadd.f32 %v608, %v702
    %v707 = vtanh.pop %v705
    %v708 = vtanh.pop %v706
    %v709 = vsub.f32 1.0, %v671
    %v710 = vsub.f32 1.0, %v686
    %713 = vrot.lane.b32.xlu0 %v707, 96
    %v714 = vpop.permute.xlu0 %713
    %715 = vrot.lane.b32.xlu0 %v708, 96
    %v716 = vpop.permute.xlu0 %715
    %v719 = vmul.f32 %v709, %v714
    %v720 = vmul.f32 %v710, %v716
    %721 = vrot.lane.b32.xlu0 %v577, 32
    %v722 = vpop.permute.xlu0 %721
    %723 = vrot.lane.b32.xlu0 %v578, 32
    %v724 = vpop.permute.xlu0 %723
    %v727 = vmul.f32 %v671, %v722
    %v728 = vmul.f32 %v686, %v724
    %v729 = vadd.f32 %v719, %v727
    %v730 = vadd.f32 %v720, %v728
    %733 = vrot.lane.b32.xlu0 %v729, 96
    %v734 = vpop.permute.xlu0 %733
    %735 = vrot.lane.b32.xlu0 %v730, 96
    %v736 = vpop.permute.xlu0 %735
    %739 = vst.msk [vmem:[#allocation14] sm:$0xff] %vm167, %v734
    %740 = vst.msk [vmem:[#allocation14 + $0x8] sm:$0xff] %vm167, %v736
    // Predicated region
    $region70: #{tpu_custom_call.1} parent=1 // pred_check
      _
    $region71: #{tpu_custom_call.1} parent=1 // pred_check_branch
      %742 = sbr.rel (0) target = $region73
    $region72: #{tpu_custom_call.1} parent=1 // pred_region
      %744 = vsyncadd [#allocation4], 0
      %s745 = sshll.u32 [#allocation14], 4
      %s746 = int_to_ptr.vmem [resolvable:$true] %s745
      %s747 = sshll.u32 %s10, 4
      %s748 = int_to_ptr.hbm [resolvable:$true] %s747
      %753 = dma.vmem_to_hbm [thread:$0]  %s746, 256, %s748, [#allocation4], 128, 128, 8
    $region73: #{tpu_custom_call.1} parent=1 // pred_fallthru
      _
    // Predicated region
    $region74: #{tpu_custom_call.1} parent=1 // pred_check
      _
    $region75: #{tpu_custom_call.1} parent=1 // pred_check_branch
      %755 = sbr.rel (0) target = $region77
    $region76: #{tpu_custom_call.1} parent=1 // pred_region
      %757 = dma.done [#allocation4], 256
    $region77: #{tpu_custom_call.1} parent=1 // pred_fallthru
      _
    %758 = vsyncpa [#allocation3], 1
    %759 = vsyncpa [#allocation6], 1
    %760 = vsyncpa [#allocation9], 1
    %761 = vsyncpa [#allocation12], 1
    %762 = vsyncpa [#allocation4], 1

</llo_original>
